<compile_context>
chip_gen: v7x
topology: tpu7x:2x2x1
jax: 0.10.0
libtpu: 0.0.40
codegen_flags: <defaults>
</compile_context>

<pallas_src>
import functools

import jax
import jax.numpy as jnp
from jax.experimental import pallas as pl
from jax.experimental.pallas import tpu as pltpu

LN_EPS = 1e-5


def _layernorm(x, gamma, beta):
    # x: (rows, E) f32; gamma/beta: (1, E) f32
    mean = jnp.mean(x, axis=-1, keepdims=True)
    var = jnp.mean((x - mean) ** 2, axis=-1, keepdims=True)
    return (x - mean) * jax.lax.rsqrt(var + LN_EPS) * gamma + beta


def _const_spec(shape):
    """BlockSpec for a weight whose block index never changes: single buffer."""
    zeros = (0,) * len(shape)
    return pl.BlockSpec(shape, lambda *_: zeros, pipeline_mode=pl.Buffered(1))


# ---------------------------------------------------------------------------
# Stage 1: norm1 + fused (K | V) projection.  x tile -> bf16 K and V tiles.
# ---------------------------------------------------------------------------
def ln_kv_kernel(x_ref, g1_ref, be1_ref, wkv_ref, bkv_ref, k_ref, v_ref):
    x = x_ref[0].astype(jnp.float32)                       # (ts, E)
    E = x.shape[-1]
    h = _layernorm(x, g1_ref[...], be1_ref[...]).astype(jnp.bfloat16)
    kv = jnp.dot(h, wkv_ref[...], preferred_element_type=jnp.float32)
    kv = (kv + bkv_ref[...]).astype(jnp.bfloat16)          # (ts, 2E)
    k_ref[0] = kv[:, :E]
    v_ref[0] = kv[:, E:]


# ---------------------------------------------------------------------------
# Stage 2: flash attention over kv tiles (online softmax) + out-proj +
#          residual + norm2 + chunked FFN + residual.
# ---------------------------------------------------------------------------
def attn_ffn_kernel(x_ref, k_ref, v_ref,
                    g1_ref, be1_ref, wq_ref, bq_ref,
                    wo_ref, bo_ref, g2_ref, be2_ref,
                    w1_ref, b1_ref, w2_ref, b2_ref,
                    out_ref,
                    q_sc, m_sc, l_sc, acc_sc,
                    *, num_heads, h_chunk):
    kv_idx = pl.program_id(2)
    nkv = pl.num_programs(2)

    x = x_ref[0].astype(jnp.float32)                       # (tq, E)
    tq, E = x.shape
    H = num_heads
    D = E // H

    # --- per (b, q-tile) initialization: Q projection + softmax state ---
    @pl.when(kv_idx == 0)
    def _():
        h1 = _layernorm(x, g1_ref[...], be1_ref[...]).astype(jnp.bfloat16)
        q = jnp.dot(h1, wq_ref[...], preferred_element_type=jnp.float32)
        q_sc[...] = (q + bq_ref[...]).astype(jnp.bfloat16)  # scale pre-folded
        m_sc[...] = jnp.full(m_sc.shape, -jnp.inf, m_sc.dtype)
        l_sc[...] = jnp.zeros(l_sc.shape, l_sc.dtype)
        acc_sc[...] = jnp.zeros(acc_sc.shape, acc_sc.dtype)

    # --- online-softmax step against this KV tile ---
    qh = q_sc[...].reshape(tq, H, D)                       # (tq, tkv are seq-major)
    kh = k_ref[0].reshape(-1, H, D)
    vh = v_ref[0].reshape(-1, H, D)

    s = jnp.einsum('qhd,khd->hqk', qh, kh,
                   preferred_element_type=jnp.float32)     # (H, tq, tkv) f32
    m_prev = m_sc[...]
    m_new = jnp.maximum(m_prev, jnp.max(s, axis=-1, keepdims=True))
    alpha = jnp.exp(m_prev - m_new)
    p = jnp.exp(s - m_new)
    l_sc[...] = alpha * l_sc[...] + jnp.sum(p, axis=-1, keepdims=True)
    acc_sc[...] = alpha * acc_sc[...] + jnp.einsum(
        'hqk,khd->hqd', p.astype(jnp.bfloat16), vh,
        preferred_element_type=jnp.float32)                # (H, tq, D) f32
    m_sc[...] = m_new

    # --- finalize on last kv step: out-proj, residuals, LN2, chunked FFN ---
    @pl.when(kv_idx == nkv - 1)
    def _():
        o = acc_sc[...] * pl.reciprocal(l_sc[...], approx=True)   # (H, tq, D)
        attn = o.transpose(1, 0, 2).reshape(tq, E).astype(jnp.bfloat16)
        attn = jnp.dot(attn, wo_ref[...], preferred_element_type=jnp.float32)
        x1 = x + attn + bo_ref[...]                        # residual 1 (f32)

        h2 = _layernorm(x1, g2_ref[...], be2_ref[...]).astype(jnp.bfloat16)

        Hdim = w1_ref.shape[1]
        n_chunks = Hdim // h_chunk

        def ffn_chunk(c, acc):
            c0 = pl.multiple_of(c * h_chunk, h_chunk)
            f = jnp.dot(h2, w1_ref[:, pl.ds(c0, h_chunk)],
                        preferred_element_type=jnp.float32)
            f = f + b1_ref[:, pl.ds(c0, h_chunk)]
            # tanh GELU -> EUP slot (VPU erf polynomial avoided).
            f = jax.nn.gelu(f, approximate=True).astype(jnp.bfloat16)
            return acc + jnp.dot(f, w2_ref[pl.ds(c0, h_chunk), :],
                                 preferred_element_type=jnp.float32)

        ffn = jax.lax.fori_loop(0, n_chunks, ffn_chunk,
                                jnp.zeros((tq, E), jnp.float32), unroll=True)
        # Dropout(0.1) -> identity in eval mode.
        out_ref[0] = (x1 + ffn + b2_ref[...]).astype(out_ref.dtype)


# ---------------------------------------------------------------------------
# Parameters (bf16 weights, K|V fused, attention scale folded into Q).
# ---------------------------------------------------------------------------
def init_params(key, embedding_dim, num_heads):
    E = embedding_dim
    Hdim = 4 * E
    D = E // num_heads
    keys = jax.random.split(key, 16)

    def lin_w(k, fan_in, fan_out):
        return jax.random.normal(k, (fan_in, fan_out), jnp.float32) / jnp.sqrt(fan_in)

    def lin_b(k, fan_out):
        return 0.02 * jax.random.normal(k, (1, fan_out), jnp.float32)

    wq, wk, wv, wo = (lin_w(keys[i], E, E) for i in range(4))
    bq, bk, bv, bo = (lin_b(keys[4 + i], E) for i in range(4))
    w1, b1 = lin_w(keys[8], E, Hdim), lin_b(keys[9], Hdim)
    w2, b2 = lin_w(keys[10], Hdim, E), lin_b(keys[11], E)

    g1 = 1.0 + 0.1 * jax.random.normal(keys[12], (1, E), jnp.float32)
    be1 = 0.1 * jax.random.normal(keys[13], (1, E), jnp.float32)
    g2 = 1.0 + 0.1 * jax.random.normal(keys[14], (1, E), jnp.float32)
    be2 = 0.1 * jax.random.normal(keys[15], (1, E), jnp.float32)

    scale = 1.0 / jnp.sqrt(jnp.float32(D))
    return dict(
        g1=g1, be1=be1, g2=g2, be2=be2,
        # Q projection (stage 2), attention scale folded in.
        wq=(wq * scale).astype(jnp.bfloat16), bq=(bq * scale).astype(jnp.float32),
        # Fused K|V projection (stage 1).
        wkv=jnp.concatenate([wk, wv], axis=1).astype(jnp.bfloat16),
        bkv=jnp.concatenate([bk, bv], axis=1).astype(jnp.float32),
        wo=wo.astype(jnp.bfloat16), bo=bo,
        w1=w1.astype(jnp.bfloat16), b1=b1,
        w2=w2.astype(jnp.bfloat16), b2=b2,
    )


# ---------------------------------------------------------------------------
# Wrapper
# ---------------------------------------------------------------------------
def spiking_transformer_block(x, params, num_heads, *,
                              seq_tile=None, kv_tile=None, ffn_chunk=1024):
    B, S, E = x.shape
    Hdim = params["w1"].shape[1]
    assert E % num_heads == 0

    # VMEM-aware limits / tiles: big tiles on 128 MiB parts, tighter on v7x.
    try:
        cap = getattr(pltpu.get_tpu_info(), "vmem_capacity_bytes", 64 * 1024 * 1024)
    except Exception:  # pragma: no cover - conservative fallback
        cap = 64 * 1024 * 1024
    big_vmem = cap >= 100 * 1024 * 1024
    vmem_limit = max(min(int(cap * 0.8), 110 * 1024 * 1024), 32 * 1024 * 1024)

    if seq_tile is None:
        seq_tile = 512 if big_vmem else 256
    if kv_tile is None:
        kv_tile = 512 if big_vmem else 256

    tq = min(seq_tile, S)
    # Keep >= 2 parallel grid steps so both TensorCores of a v7x chip are used.
    while (B * (S // tq) < 2 and tq % 2 == 0 and (tq // 2) % 8 == 0
           and S % (tq // 2) == 0):
        tq //= 2
    tkv = min(kv_tile, S)
    assert S % tq == 0 and S % tkv == 0, "S must be divisible by the tile sizes"
    h_chunk = min(ffn_chunk, Hdim)
    assert Hdim % h_chunk == 0

    # ---- Stage 1: norm1 + fused K|V projection (bf16 outputs) ----
    k, v = pl.pallas_call(
        ln_kv_kernel,
        out_shape=(jax.ShapeDtypeStruct((B, S, E), jnp.bfloat16),
                   jax.ShapeDtypeStruct((B, S, E), jnp.bfloat16)),
        grid=(B, S // tq),
        in_specs=[
            pl.BlockSpec((1, tq, E), lambda b, i: (b, i, 0)),   # x tile
            _const_spec((1, E)),                                # ln1 gamma
            _const_spec((1, E)),                                # ln1 beta
            _const_spec((E, 2 * E)),                            # Wkv (bf16)
            _const_spec((1, 2 * E)),                            # bkv
        ],
        out_specs=(pl.BlockSpec((1, tq, E), lambda b, i: (b, i, 0)),
                   pl.BlockSpec((1, tq, E), lambda b, i: (b, i, 0))),
        compiler_params=pltpu.CompilerParams(
            dimension_semantics=("parallel", "parallel"),
            vmem_limit_bytes=vmem_limit),
    )(x, params["g1"], params["be1"], params["wkv"], params["bkv"])

    # ---- Stage 2: flash attention + out-proj + residual + norm2 + FFN ----
    kernel = functools.partial(attn_ffn_kernel,
                               num_heads=num_heads, h_chunk=h_chunk)
    out = pl.pallas_call(
        kernel,
        out_shape=jax.ShapeDtypeStruct((B, S, E), x.dtype),
        grid=(B, S // tq, S // tkv),
        in_specs=[
            pl.BlockSpec((1, tq, E), lambda b, q, kv: (b, q, 0)),   # x tile
            pl.BlockSpec((1, tkv, E), lambda b, q, kv: (b, kv, 0)), # K tile
            pl.BlockSpec((1, tkv, E), lambda b, q, kv: (b, kv, 0)), # V tile
            _const_spec((1, E)),          # ln1 gamma (for Q path)
            _const_spec((1, E)),          # ln1 beta
            _const_spec((E, E)),          # Wq (scale folded, bf16)
            _const_spec((1, E)),          # bq
            _const_spec((E, E)),          # Wo
            _const_spec((1, E)),          # bo
            _const_spec((1, E)),          # ln2 gamma
            _const_spec((1, E)),          # ln2 beta
            _const_spec((E, Hdim)),       # W1
            _const_spec((1, Hdim)),       # b1
            _const_spec((Hdim, E)),       # W2
            _const_spec((1, E)),          # b2
        ],
        out_specs=pl.BlockSpec((1, tq, E), lambda b, q, kv: (b, q, 0)),
        scratch_shapes=[
            pltpu.VMEM((tq, E), jnp.bfloat16),                           # Q tile
            pltpu.VMEM((num_heads, tq, 1), jnp.float32),                 # running max
            pltpu.VMEM((num_heads, tq, 1), jnp.float32),                 # running sum
            pltpu.VMEM((num_heads, tq, E // num_heads), jnp.float32),    # PV acc
        ],
        compiler_params=pltpu.CompilerParams(
            dimension_semantics=("parallel", "parallel", "arbitrary"),
            vmem_limit_bytes=vmem_limit),
    )(x, k, v,
      params["g1"], params["be1"], params["wq"], params["bq"],
      params["wo"], params["bo"], params["g2"], params["be2"],
      params["w1"], params["b1"], params["w2"], params["b2"])

    # TODO(synk): AdaptiveSpikingAttention metrics are unspecified; placeholder.
    metrics = {"avg_spike_timesteps": jnp.float32(0.0)}
    return out, metrics


# ---------------------------------------------------------------------------
# Pure-JAX reference (same packed bf16 weights, f32 activations, erf GELU).
# ---------------------------------------------------------------------------
def reference_forward(x, params, num_heads):
    E = x.shape[-1]
    f32 = lambda a: a.astype(jnp.float32)

    def ln(z, g, b):
        m = jnp.mean(z, -1, keepdims=True)
        v = jnp.mean((z - m) ** 2, -1, keepdims=True)
        return (z - m) * jax.lax.rsqrt(v + LN_EPS) * g + b

    x = f32(x)
    B, S, _ = x.shape
    H = num_heads
    D = E // H

    h = ln(x, params["g1"], params["be1"])
    q = h @ f32(params["wq"]) + params["bq"]            # scale pre-folded
    kv = h @ f32(params["wkv"]) + params["bkv"]
    k, v = kv[..., :E], kv[..., E:]
    qh = q.reshape(B, S, H, D).transpose(0, 2, 1, 3)
    kh = k.reshape(B, S, H, D).transpose(0, 2, 1, 3)
    vh = v.reshape(B, S, H, D).transpose(0, 2, 1, 3)
    p = jax.nn.softmax(qh @ kh.transpose(0, 1, 3, 2), axis=-1)
    o = (p @ vh).transpose(0, 2, 1, 3).reshape(B, S, E)
    x1 = x + o @ f32(params["wo"]) + params["bo"]
    h2 = ln(x1, params["g2"], params["be2"])
    f = jax.nn.gelu(h2 @ f32(params["w1"]) + params["b1"], approximate=False)
    return x1 + f @ f32(params["w2"]) + params["b2"]


if __name__ == "__main__":
    # Small but tile-aligned shapes (E multiple of 128 -> lane-dense stores).
    # Explicit small tiles so the multi-kv-step online softmax and the
    # multi-chunk FFN fori_loop paths are both exercised.
    B, S, E, num_heads = 2, 256, 128, 4
    key = jax.random.PRNGKey(0)
    kx, kp = jax.random.split(key)
    x = jax.random.normal(kx, (B, S, E), jnp.float32)
    params = init_params(kp, E, num_heads)

    out, metrics = spiking_transformer_block(
        x, params, num_heads, seq_tile=128, kv_tile=128, ffn_chunk=256)
    jax.block_until_ready(out)
    assert out.shape == (B, S, E)

    ref = reference_forward(x, params, num_heads)
    err = float(jnp.max(jnp.abs(out.astype(jnp.float32) - ref)))
    assert err < 0.2, f"max abs error vs reference too large: {err}"
    print("KERNEL_OK")
</pallas_src>

<mosaic_0001>
module attributes {stable_mosaic.version = 11 : i64} {
  func.func @ln_kv_kernel(%arg0: i32, %arg1: i32, %arg2: memref<1x128x128xf32, #tpu.memory_space<vmem>>, %arg3: memref<1x128xf32, #tpu.memory_space<vmem>>, %arg4: memref<1x128xf32, #tpu.memory_space<vmem>>, %arg5: memref<128x256xbf16, #tpu.memory_space<vmem>>, %arg6: memref<1x256xf32, #tpu.memory_space<vmem>>, %arg7: memref<1x128x128xbf16, #tpu.memory_space<vmem>>, %arg8: memref<1x128x128xbf16, #tpu.memory_space<vmem>>) attributes {dimension_semantics = [#tpu.dimension_semantics<parallel>, #tpu.dimension_semantics<parallel>], iteration_bounds = array<i64: 2, 2>, scalar_prefetch = 0 : i64, scratch_operands = 0 : i64, tpu.core_type = #tpu.core_type<tc>, window_params = [{transform_indices = @transform_0, window_bounds = array<i64: 1, 128, 128>}, {pipeline_mode = #tpu.pipeline_mode<synchronous>, transform_indices = @transform_1, window_bounds = array<i64: 1, 128>}, {pipeline_mode = #tpu.pipeline_mode<synchronous>, transform_indices = @transform_2, window_bounds = array<i64: 1, 128>}, {pipeline_mode = #tpu.pipeline_mode<synchronous>, transform_indices = @transform_3, window_bounds = array<i64: 128, 256>}, {pipeline_mode = #tpu.pipeline_mode<synchronous>, transform_indices = @transform_4, window_bounds = array<i64: 1, 256>}, {transform_indices = @transform_5, window_bounds = array<i64: 1, 128, 128>}, {transform_indices = @transform_6, window_bounds = array<i64: 1, 128, 128>}]} {
    %c0 = arith.constant 0 : index
    %c0_0 = arith.constant 0 : index
    %c0_1 = arith.constant 0 : index
    %0 = vector.load %arg2[%c0, %c0_0, %c0_1] : memref<1x128x128xf32, #tpu.memory_space<vmem>>, vector<1x128x128xf32>
    %1 = vector.shape_cast %0 : vector<1x128x128xf32> to vector<128x128xf32>
    %c0_2 = arith.constant 0 : index
    %c0_3 = arith.constant 0 : index
    %2 = vector.load %arg3[%c0_2, %c0_3] : memref<1x128xf32, #tpu.memory_space<vmem>>, vector<1x128xf32>
    %c0_4 = arith.constant 0 : index
    %c0_5 = arith.constant 0 : index
    %3 = vector.load %arg4[%c0_4, %c0_5] : memref<1x128xf32, #tpu.memory_space<vmem>>, vector<1x128xf32>
    %cst = arith.constant dense<0.000000e+00> : vector<128xf32>
    %4 = vector.multi_reduction <add>, %1, %cst [1] : vector<128x128xf32> to vector<128xf32>
    %5 = vector.shape_cast %4 : vector<128xf32> to vector<128x1xf32>
    %cst_6 = arith.constant 1.280000e+02 : f32
    %6 = vector.broadcast %cst_6 : f32 to vector<128x1xf32>
    %7 = arith.divf %5, %6 : vector<128x1xf32>
    %8 = vector.broadcast %7 : vector<128x1xf32> to vector<128x128xf32>
    %9 = arith.subf %1, %8 : vector<128x128xf32>
    %10 = arith.mulf %9, %9 : vector<128x128xf32>
    %cst_7 = arith.constant dense<0.000000e+00> : vector<128xf32>
    %11 = vector.multi_reduction <add>, %10, %cst_7 [1] : vector<128x128xf32> to vector<128xf32>
    %12 = vector.shape_cast %11 : vector<128xf32> to vector<128x1xf32>
    %cst_8 = arith.constant 1.280000e+02 : f32
    %13 = vector.broadcast %cst_8 : f32 to vector<128x1xf32>
    %14 = arith.divf %12, %13 : vector<128x1xf32>
    %15 = vector.broadcast %7 : vector<128x1xf32> to vector<128x128xf32>
    %16 = arith.subf %1, %15 : vector<128x128xf32>
    %cst_9 = arith.constant 9.99999974E-6 : f32
    %17 = vector.broadcast %cst_9 : f32 to vector<128x1xf32>
    %18 = arith.addf %14, %17 : vector<128x1xf32>
    %19 = math.rsqrt %18 : vector<128x1xf32>
    %20 = vector.broadcast %19 : vector<128x1xf32> to vector<128x128xf32>
    %21 = arith.mulf %16, %20 : vector<128x128xf32>
    %22 = vector.broadcast %2 : vector<1x128xf32> to vector<128x128xf32>
    %23 = arith.mulf %21, %22 : vector<128x128xf32>
    %24 = vector.broadcast %3 : vector<1x128xf32> to vector<128x128xf32>
    %25 = arith.addf %23, %24 : vector<128x128xf32>
    %26 = arith.truncf %25 : vector<128x128xf32> to vector<128x128xbf16>
    %c0_10 = arith.constant 0 : index
    %c0_11 = arith.constant 0 : index
    %27 = vector.load %arg5[%c0_10, %c0_11] : memref<128x256xbf16, #tpu.memory_space<vmem>>, vector<128x256xbf16>
    %cst_12 = arith.constant dense<0.000000e+00> : vector<128x256xf32>
    %28 = tpu.matmul %26, %27, %cst_12 {dimension_numbers = #tpu.dot_dimension_numbers<[1], [0], [0], [1], [0, 0, 1, 1], [], []>} : vector<128x128xbf16>, vector<128x256xbf16>, vector<128x256xf32> -> vector<128x256xf32>
    %c0_13 = arith.constant 0 : index
    %c0_14 = arith.constant 0 : index
    %29 = vector.load %arg6[%c0_13, %c0_14] : memref<1x256xf32, #tpu.memory_space<vmem>>, vector<1x256xf32>
    %30 = vector.broadcast %29 : vector<1x256xf32> to vector<128x256xf32>
    %31 = arith.addf %28, %30 : vector<128x256xf32>
    %32 = arith.truncf %31 : vector<128x256xf32> to vector<128x256xbf16>
    %33 = vector.extract_strided_slice %32 {offsets = [0, 0], sizes = [128, 128], strides = [1, 1]} : vector<128x256xbf16> to vector<128x128xbf16>
    %c0_15 = arith.constant 0 : index
    %c0_16 = arith.constant 0 : index
    %c0_17 = arith.constant 0 : index
    %34 = vector.load %arg7[%c0_15, %c0_16, %c0_17] : memref<1x128x128xbf16, #tpu.memory_space<vmem>>, vector<1x128x128xbf16>
    %35 = vector.shape_cast %34 : vector<1x128x128xbf16> to vector<128x128xbf16>
    %36 = vector.shape_cast %33 : vector<128x128xbf16> to vector<1x128x128xbf16>
    tpu.vector_store %arg7[%c0_15, %c0_16, %c0_17], %36 {strides = array<i32>} : memref<1x128x128xbf16, #tpu.memory_space<vmem>>, vector<1x128x128xbf16>,
    %37 = vector.extract_strided_slice %32 {offsets = [0, 128], sizes = [128, 128], strides = [1, 1]} : vector<128x256xbf16> to vector<128x128xbf16>
    %c0_18 = arith.constant 0 : index
    %c0_19 = arith.constant 0 : index
    %c0_20 = arith.constant 0 : index
    %38 = vector.load %arg8[%c0_18, %c0_19, %c0_20] : memref<1x128x128xbf16, #tpu.memory_space<vmem>>, vector<1x128x128xbf16>
    %39 = vector.shape_cast %38 : vector<1x128x128xbf16> to vector<128x128xbf16>
    %40 = vector.shape_cast %37 : vector<128x128xbf16> to vector<1x128x128xbf16>
    tpu.vector_store %arg8[%c0_18, %c0_19, %c0_20], %40 {strides = array<i32>} : memref<1x128x128xbf16, #tpu.memory_space<vmem>>, vector<1x128x128xbf16>,
    return
  }
  func.func @transform_0(%arg0: i32, %arg1: i32) -> (i32, i32, i32) {
    %c0_i32 = arith.constant 0 : i32
    %c0_i32_0 = arith.constant 0 : i32
    return %arg0, %arg1, %c0_i32 : i32, i32, i32
  }
  func.func @transform_1(%arg0: i32, %arg1: i32) -> (i32, i32) {
    %c0_i32 = arith.constant 0 : i32
    %c0_i32_0 = arith.constant 0 : i32
    %c0_i32_1 = arith.constant 0 : i32
    return %c0_i32, %c0_i32_0 : i32, i32
  }
  func.func @transform_2(%arg0: i32, %arg1: i32) -> (i32, i32) {
    %c0_i32 = arith.constant 0 : i32
    %c0_i32_0 = arith.constant 0 : i32
    %c0_i32_1 = arith.constant 0 : i32
    return %c0_i32, %c0_i32_0 : i32, i32
  }
  func.func @transform_3(%arg0: i32, %arg1: i32) -> (i32, i32) {
    %c0_i32 = arith.constant 0 : i32
    %c0_i32_0 = arith.constant 0 : i32
    %c0_i32_1 = arith.constant 0 : i32
    return %c0_i32, %c0_i32_0 : i32, i32
  }
  func.func @transform_4(%arg0: i32, %arg1: i32) -> (i32, i32) {
    %c0_i32 = arith.constant 0 : i32
    %c0_i32_0 = arith.constant 0 : i32
    %c0_i32_1 = arith.constant 0 : i32
    return %c0_i32, %c0_i32_0 : i32, i32
  }
  func.func @transform_5(%arg0: i32, %arg1: i32) -> (i32, i32, i32) {
    %c0_i32 = arith.constant 0 : i32
    %c0_i32_0 = arith.constant 0 : i32
    return %arg0, %arg1, %c0_i32 : i32, i32, i32
  }
  func.func @transform_6(%arg0: i32, %arg1: i32) -> (i32, i32, i32) {
    %c0_i32 = arith.constant 0 : i32
    %c0_i32_0 = arith.constant 0 : i32
    return %arg0, %arg1, %c0_i32 : i32, i32, i32
  }
}

</mosaic_0001>

<llo_original>
// kernel: tpu_custom_call.1
$region0: #{tpu_custom_call.1}
  #allocation0 [shape = 'u32[]', space=smem, size = 0x4, offset = 0x4, fixed_abs, tag = 'smem constant byte address 0x4 - core index']
  #allocation1 [shape = 'u32[144,128]{1,0:T(1,128)}', space=vmem, size = 0x12000, scoped, tag = 'internal scratch']
  %s0 = inlined_call_operand.hbm [shape: f32[2,256,128], index: 0, kind: input, shape index: {}]
  %s1 = inlined_call_operand.vmem [shape: f32[1,128], index: 1, kind: input, shape index: {}]
  %s2 = inlined_call_operand.vmem [shape: f32[1,128], index: 2, kind: input, shape index: {}]
  %s3 = inlined_call_operand.hbm [shape: bf16[128,256], index: 3, kind: input, shape index: {}]
  %s4 = inlined_call_operand.vmem [shape: f32[1,256], index: 4, kind: input, shape index: {}]
  %s5 = inlined_call_operand.hbm [shape: bf16[2,256,128], index: 5, kind: output, shape index: {0}]
  %s6 = inlined_call_operand.hbm [shape: bf16[2,256,128], index: 6, kind: output, shape index: {1}]
  %7 = xla_tuple %s5, %s6
  %s8 = sld [smem:[#allocation0]]
  $region69: #{tpu_custom_call.1} parent=0
    _
  %s10 = ssub.s32 1, %s8
  %s11 = scalar_select 0, %s10, %s8
  $region1: #{tpu_custom_call.1} parent=0
    #allocation2 [shape = 'u8[131072]{0}', space=vmem, size = 0x20000, scoped, tag = 'input window, operand 0']
    #allocation3 [shape = 's32[2]{0}', space=sflag, size = 0x8, scoped, tag = 'scoped memory for tpu_custom_call.1']
    #allocation4 [shape = 's32[2]{0}', space=sflag, size = 0x8, scoped, tag = 'scoped memory for tpu_custom_call.1']
    #allocation5 [shape = 'u8[65536]{0}', space=vmem, size = 0x10000, scoped, tag = 'input window, operand 3, single buffered']
    #allocation6 [shape = 's32[1]{0}', space=sflag, size = 0x4, scoped, tag = 'scoped memory for tpu_custom_call.1']
    #allocation7 [shape = 'u8[65536]{0}', space=vmem, size = 0x10000, scoped, tag = 'output window, operand 0']
    #allocation8 [shape = 'u8[65536]{0}', space=vmem, size = 0x10000, scoped, tag = 'output window, operand 1']
    #allocation9 [shape = 's32[2]{0}', space=sflag, size = 0x8, scoped, tag = 'scoped memory for tpu_custom_call.1']
    %12 = vsyncpa [#allocation3], 0
    %s13 = scalar_lea.sflag [#allocation3], 1
    %14 = vsyncpa %s13, 0
    %15 = vsyncpa [#allocation6], 0
    %16 = vsyncpa [#allocation4], 0
    %s17 = scalar_lea.sflag [#allocation4], 1
    %18 = vsyncpa %s17, 0
    %19 = vsyncpa [#allocation9], 0
    %s20 = scalar_lea.sflag [#allocation9], 1
    %21 = vsyncpa %s20, 0
    loop: start=0, step=1, limit=6
    $region2: #{tpu_custom_call.1} parent=1 // loop_pre_header
      _
    $region3: #{tpu_custom_call.1} parent=1 // loop_header
      %s23 = sphi 0, %s27
      %p24 = scmp.ge.s32.totalorder %s23, 6
      %s30 = sphi 0, %s42
      %s31 = sphi 0, %s38
      %s32 = sphi 0, %s30
      %s33 = sphi 0, %s31
      %s34 = sphi 0, %s32
      %s35 = sphi 0, %s33
      %s47 = sphi 0, %s49
      %s50 = sphi 0, %s47
      %s51 = sphi 0, %s50
      %s67 = sphi 0, %s51
      %s71 = sphi 0, %s71
      %s73 = sphi 0, %s71
      %s74 = sphi 0, %s73
      %s88 = sphi 0, %s74
      %s92 = sphi 0, %s92
      %s94 = sphi 0, %s92
      %s95 = sphi 0, %s94
      %s109 = sphi 0, %s95
      %s113 = sphi 0, %s113
      %s115 = sphi 0, %s113
      %s116 = sphi 0, %s115
      %s130 = sphi 0, %s116
      %s134 = sphi 0, %s134
      %s136 = sphi 0, %s134
      %s137 = sphi 0, %s136
      %s151 = sphi 0, %s137
      %s159 = sphi 0, %s161
      %s162 = sphi 0, %s159
      %s163 = sphi 0, %s162
      %s179 = sphi 0, %s163
      %s187 = sphi 0, %s189
      %s190 = sphi 0, %s187
      %s191 = sphi 0, %s190
      %s207 = sphi 0, %s191
    $region4: #{tpu_custom_call.1} parent=1 // loop_header_branch
      %26 = sbr.rel (%p24) target = $region8
    $region5: #{tpu_custom_call.1} parent=1 // loop_body
      %s28 = ssub.s32 %s23, 1
      %s29 = ssub.s32 %s23, 2
      %s36 = sadd.s32 1, %s31
      %p37 = scmp.ge.s32.totalorder %s36, 2
      %s38 = scalar_select %p37, 0, %s36
      %s39 = sadd.s32 1, %s30
      %s40 = scalar_select %p37, %s39, %s30
      %p41 = scmp.ge.s32.totalorder %s40, 2
      %s42 = scalar_select %p41, 0, %s40
      %s43 = ssub.s32 %s30, %s42
      %s44 = ssub.s32 %s31, %s38
      %s45 = sor.u32 %s43, %s44
      %p46 = scmp.eq.s32.totalorder %s45, 0
      %s48 = sadd.s32 %s47, 1
      %s49 = scalar_select %p46, %s47, %s48
      %p52 = pneg %p46
      %p53 = scmp.eq.s32.totalorder %s23, 3
      %p54 = por %p52, %p53
      %p55 = scmp.ne.s32.totalorder %s47, %s50
      %p56 = scmp.eq.s32.totalorder %s23, 0
      %p57 = por %p55, %p56
      %p58 = scmp.ne.s32.totalorder %s47, %s50
      %p59 = scmp.eq.s32.totalorder %s28, 3
      %p60 = por %p58, %p59
      %p61 = scmp.ne.s32.totalorder %s50, %s51
      %p62 = scmp.eq.s32.totalorder %s28, 0
      %p63 = por %p61, %p62
      %p64 = scmp.ne.s32.totalorder %s50, %s51
      %p65 = scmp.eq.s32.totalorder %s29, 3
      %p66 = por %p64, %p65
      %p68 = scmp.ne.s32.totalorder %s51, %s67
      %p69 = scmp.eq.s32.totalorder %s29, 0
      %p70 = por %p68, %p69
      %s72 = sadd.s32 %s71, 1
      %p75 = scmp.eq.s32.totalorder %s23, 3
      %p76 = scmp.ne.s32.totalorder %s71, %s73
      %p77 = scmp.eq.s32.totalorder %s23, 0
      %p78 = por %p76, %p77
      %p79 = scmp.ne.s32.totalorder %s71, %s73
      %p80 = scmp.eq.s32.totalorder %s28, 3
      %p81 = por %p79, %p80
      %p82 = scmp.ne.s32.totalorder %s73, %s74
      %p83 = scmp.eq.s32.totalorder %s28, 0
      %p84 = por %p82, %p83
      %p85 = scmp.ne.s32.totalorder %s73, %s74
      %p86 = scmp.eq.s32.totalorder %s29, 3
      %p87 = por %p85, %p86
      %p89 = scmp.ne.s32.totalorder %s74, %s88
      %p90 = scmp.eq.s32.totalorder %s29, 0
      %p91 = por %p89, %p90
      %s93 = sadd.s32 %s92, 1
      %p96 = scmp.eq.s32.totalorder %s23, 3
      %p97 = scmp.ne.s32.totalorder %s92, %s94
      %p98 = scmp.eq.s32.totalorder %s23, 0
      %p99 = por %p97, %p98
      %p100 = scmp.ne.s32.totalorder %s92, %s94
      %p101 = scmp.eq.s32.totalorder %s28, 3
      %p102 = por %p100, %p101
      %p103 = scmp.ne.s32.totalorder %s94, %s95
      %p104 = scmp.eq.s32.totalorder %s28, 0
      %p105 = por %p103, %p104
      %p106 = scmp.ne.s32.totalorder %s94, %s95
      %p107 = scmp.eq.s32.totalorder %s29, 3
      %p108 = por %p106, %p107
      %p110 = scmp.ne.s32.totalorder %s95, %s109
      %p111 = scmp.eq.s32.totalorder %s29, 0
      %p112 = por %p110, %p111
      %s114 = sadd.s32 %s113, 1
      %p117 = scmp.eq.s32.totalorder %s23, 3
      %p118 = scmp.ne.s32.totalorder %s113, %s115
      %p119 = scmp.eq.s32.totalorder %s23, 0
      %p120 = por %p118, %p119
      %p121 = scmp.ne.s32.totalorder %s113, %s115
      %p122 = scmp.eq.s32.totalorder %s28, 3
      %p123 = por %p121, %p122
      %p124 = scmp.ne.s32.totalorder %s115, %s116
      %p125 = scmp.eq.s32.totalorder %s28, 0
      %p126 = por %p124, %p125
      %p127 = scmp.ne.s32.totalorder %s115, %s116
      %p128 = scmp.eq.s32.totalorder %s29, 3
      %p129 = por %p127, %p128
      %p131 = scmp.ne.s32.totalorder %s116, %s130
      %p132 = scmp.eq.s32.totalorder %s29, 0
      %p133 = por %p131, %p132
      %s135 = sadd.s32 %s134, 1
      %p138 = scmp.eq.s32.totalorder %s23, 3
      %p139 = scmp.ne.s32.totalorder %s134, %s136
      %p140 = scmp.eq.s32.totalorder %s23, 0
      %p141 = por %p139, %p140
      %p142 = scmp.ne.s32.totalorder %s134, %s136
      %p143 = scmp.eq.s32.totalorder %s28, 3
      %p144 = por %p142, %p143
      %p145 = scmp.ne.s32.totalorder %s136, %s137
      %p146 = scmp.eq.s32.totalorder %s28, 0
      %p147 = por %p145, %p146
      %p148 = scmp.ne.s32.totalorder %s136, %s137
      %p149 = scmp.eq.s32.totalorder %s29, 3
      %p150 = por %p148, %p149
      %p152 = scmp.ne.s32.totalorder %s137, %s151
      %p153 = scmp.eq.s32.totalorder %s29, 0
      %p154 = por %p152, %p153
      %s155 = ssub.s32 %s30, %s42
      %s156 = ssub.s32 %s31, %s38
      %s157 = sor.u32 %s155, %s156
      %p158 = scmp.eq.s32.totalorder %s157, 0
      %s160 = sadd.s32 %s159, 1
      %s161 = scalar_select %p158, %s159, %s160
      %p164 = pneg %p158
      %p165 = scmp.eq.s32.totalorder %s23, 3
      %p166 = por %p164, %p165
      %p167 = scmp.ne.s32.totalorder %s159, %s162
      %p168 = scmp.eq.s32.totalorder %s23, 0
      %p169 = por %p167, %p168
      %p170 = scmp.ne.s32.totalorder %s159, %s162
      %p171 = scmp.eq.s32.totalorder %s28, 3
      %p172 = por %p170, %p171
      %p173 = scmp.ne.s32.totalorder %s162, %s163
      %p174 = scmp.eq.s32.totalorder %s28, 0
      %p175 = por %p173, %p174
      %p176 = scmp.ne.s32.totalorder %s162, %s163
      %p177 = scmp.eq.s32.totalorder %s29, 3
      %p178 = por %p176, %p177
      %p180 = scmp.ne.s32.totalorder %s163, %s179
      %p181 = scmp.eq.s32.totalorder %s29, 0
      %p182 = por %p180, %p181
      %s183 = ssub.s32 %s30, %s42
      %s184 = ssub.s32 %s31, %s38
      %s185 = sor.u32 %s183, %s184
      %p186 = scmp.eq.s32.totalorder %s185, 0
      %s188 = sadd.s32 %s187, 1
      %s189 = scalar_select %p186, %s187, %s188
      %p192 = pneg %p186
      %p193 = scmp.eq.s32.totalorder %s23, 3
      %p194 = por %p192, %p193
      %p195 = scmp.ne.s32.totalorder %s187, %s190
      %p196 = scmp.eq.s32.totalorder %s23, 0
      %p197 = por %p195, %p196
      %p198 = scmp.ne.s32.totalorder %s187, %s190
      %p199 = scmp.eq.s32.totalorder %s28, 3
      %p200 = por %p198, %p199
      %p201 = scmp.ne.s32.totalorder %s190, %s191
      %p202 = scmp.eq.s32.totalorder %s28, 0
      %p203 = por %p201, %p202
      %p204 = scmp.ne.s32.totalorder %s190, %s191
      %p205 = scmp.eq.s32.totalorder %s29, 3
      %p206 = por %p204, %p205
      %p208 = scmp.ne.s32.totalorder %s191, %s207
      %p209 = scmp.eq.s32.totalorder %s29, 0
      %p210 = por %p208, %p209
      %p211 = scmp.le.s32.totalorder 1, %s23
      %p212 = scmp.lt.s32.totalorder %s23, 5
      %p213 = pnand %p211, %p212
      %p214 = pneg %p213
      // Predicated region
      $region9: #{tpu_custom_call.1} parent=5 // pred_check
        _
      $region10: #{tpu_custom_call.1} parent=5 // pred_check_branch
        %216 = sbr.rel (%p213) target = $region12
      $region11: #{tpu_custom_call.1} parent=5 // pred_region
        %s217 = ssub.s32 %s23, 1
        // Predicated region
        $region13: #{tpu_custom_call.1} parent=11 // pred_check
          %p218 = pneg %p84
        $region14: #{tpu_custom_call.1} parent=11 // pred_check_branch
          %220 = sbr.rel (%p218) target = $region16
        $region15: #{tpu_custom_call.1} parent=11 // pred_region
          _
        $region16: #{tpu_custom_call.1} parent=11 // pred_fallthru
          _
        // Predicated region
        $region17: #{tpu_custom_call.1} parent=11 // pred_check
          %p221 = pneg %p105
        $region18: #{tpu_custom_call.1} parent=11 // pred_check_branch
          %223 = sbr.rel (%p221) target = $region20
        $region19: #{tpu_custom_call.1} parent=11 // pred_region
          _
        $region20: #{tpu_custom_call.1} parent=11 // pred_fallthru
          _
        // Predicated region
        $region21: #{tpu_custom_call.1} parent=11 // pred_check
          %p224 = pneg %p126
        $region22: #{tpu_custom_call.1} parent=11 // pred_check_branch
          %226 = sbr.rel (%p224) target = $region24
        $region23: #{tpu_custom_call.1} parent=11 // pred_region
          %s228 = ssub.s32 2048, 2048
          %229 = vsyncadd [#allocation6], %s228
          %s230 = sshll.u32 [#allocation5], 4
          %s231 = int_to_ptr.vmem [resolvable:$true] %s230
          %236 = dma.hbm_to_vmem [thread:$0]  %s3, 2048, %s231, [#allocation6], 128, 128, 8
        $region24: #{tpu_custom_call.1} parent=11 // pred_fallthru
          _
        // Predicated region
        $region25: #{tpu_custom_call.1} parent=11 // pred_check
          %p237 = pneg %p147
        $region26: #{tpu_custom_call.1} parent=11 // pred_check_branch
          %239 = sbr.rel (%p237) target = $region28
        $region27: #{tpu_custom_call.1} parent=11 // pred_region
          _
        $region28: #{tpu_custom_call.1} parent=11 // pred_fallthru
          _
      $region12: #{tpu_custom_call.1} parent=5 // pred_fallthru
        _
      %p240 = scmp.lt.s32.totalorder %s23, 4
      // Predicated region
      $region29: #{tpu_custom_call.1} parent=5 // pred_check
        %p241 = pneg %p240
      $region30: #{tpu_custom_call.1} parent=5 // pred_check_branch
        %243 = sbr.rel (%p241) target = $region32
      $region31: #{tpu_custom_call.1} parent=5 // pred_region
        // Predicated region
        $region33: #{tpu_custom_call.1} parent=31 // pred_check
          %p244 = pneg %p57
        $region34: #{tpu_custom_call.1} parent=31 // pred_check_branch
          %246 = sbr.rel (%p244) target = $region36
        $region35: #{tpu_custom_call.1} parent=31 // pred_region
          %s247 = sand.u32 %s47, 1
          %s248 = scalar_lea.sflag [#allocation3], %s247
          %s249 = sand.u32 %s47, 1
          %s250 = smul.addr %s249, 128
          %s251 = scalar_lea.vmem [#allocation2], %s250
          %s252 = smul.u32 16, %s31
          %s254 = ssub.s32 2048, 2048
          %255 = vsyncadd %s248, %s254
          %s256 = smul.addr %s30, 32
          %s257 = sadd.s32 %s252, %s256
          %s258 = smul.addr %s257, 128
          %s259 = scalar_lea.hbm %s0, %s258
          %s260 = sshll.u32 %s251, 4
          %s261 = int_to_ptr.vmem [resolvable:$true] %s260
          %266 = dma.hbm_to_vmem [thread:$0]  %s259, 2048, %s261, %s248, 128, 128, 8
        $region36: #{tpu_custom_call.1} parent=31 // pred_fallthru
          _
      $region32: #{tpu_custom_call.1} parent=5 // pred_fallthru
        _
      %p267 = scmp.le.s32.totalorder 1, %s23
      %p268 = scmp.lt.s32.totalorder %s23, 5
      %p269 = pnand %p267, %p268
      %p270 = pneg %p269
      // Predicated region
      $region37: #{tpu_custom_call.1} parent=5 // pred_check
        _
      $region38: #{tpu_custom_call.1} parent=5 // pred_check_branch
        %272 = sbr.rel (%p269) target = $region40
      $region39: #{tpu_custom_call.1} parent=5 // pred_region
        %s273 = ssub.s32 %s23, 1
        %s274 = sand.u32 %s50, 1
        %s275 = scalar_lea.sflag [#allocation3], %s274
        %s276 = sand.u32 %s50, 1
        %s277 = smul.addr %s276, 128
        %s278 = scalar_lea.vmem [#allocation2], %s277
        // Predicated region
        $region41: #{tpu_custom_call.1} parent=39 // pred_check
          %p279 = pneg %p63
        $region42: #{tpu_custom_call.1} parent=39 // pred_check_branch
          %281 = sbr.rel (%p279) target = $region44
        $region43: #{tpu_custom_call.1} parent=39 // pred_region
          %282 = dma.done %s275, 2048
        $region44: #{tpu_custom_call.1} parent=39 // pred_fallthru
          _
        // Predicated region
        $region45: #{tpu_custom_call.1} parent=39 // pred_check
          %p283 = pneg %p126
        $region46: #{tpu_custom_call.1} parent=39 // pred_check_branch
          %285 = sbr.rel (%p283) target = $region48
        $region47: #{tpu_custom_call.1} parent=39 // pred_region
          %286 = dma.done [#allocation6], 2048
        $region48: #{tpu_custom_call.1} parent=39 // pred_fallthru
          _
        %s287 = sand.u32 %s50, 1
        %s288 = scalar_lea.sflag [#allocation3], %s287
        %s289 = sand.u32 %s50, 1
        %s290 = smul.addr %s289, 128
        %s291 = scalar_lea.vmem [#allocation2], %s290
        %p292 = pneg %p63
        %p293 = pneg %p60
        %p294 = pneg %p84
        %p295 = pneg %p81
        %p296 = pneg %p105
        %p297 = pneg %p102
        %p298 = pneg %p126
        %p299 = pneg %p123
        %p300 = pneg %p147
        %p301 = pneg %p144
        %p302 = pneg %p175
        %p303 = pneg %p172
        %s304 = sand.u32 %s162, 1
        %s305 = scalar_lea.sflag [#allocation4], %s304
        %s306 = sand.u32 %s162, 1
        %s307 = smul.addr %s306, 64
        %s308 = scalar_lea.vmem [#allocation7], %s307
        %p309 = pneg %p203
        %p310 = pneg %p200
        %s311 = sand.u32 %s190, 1
        %s312 = scalar_lea.sflag [#allocation9], %s311
        %s313 = sand.u32 %s190, 1
        %s314 = smul.addr %s313, 64
        %s315 = scalar_lea.vmem [#allocation8], %s314
        %s316 = smul.u32 16, %s33
        %s317 = smul.u32 16, %s33
        %s318 = smul.u32 16, %s33
        %v320 = vld [vmem:[%s278] sm:$0xff]
        %v321 = vld [vmem:[%s278 + $0x8] sm:$0xff]
        %v322 = vld [vmem:[%s278 + $0x10] sm:$0xff]
        %v323 = vld [vmem:[%s278 + $0x18] sm:$0xff]
        %v324 = vld [vmem:[%s278 + $0x20] sm:$0xff]
        %v325 = vld [vmem:[%s278 + $0x28] sm:$0xff]
        %v326 = vld [vmem:[%s278 + $0x30] sm:$0xff]
        %v327 = vld [vmem:[%s278 + $0x38] sm:$0xff]
        %v328 = vld [vmem:[%s278 + $0x40] sm:$0xff]
        %v329 = vld [vmem:[%s278 + $0x48] sm:$0xff]
        %v330 = vld [vmem:[%s278 + $0x50] sm:$0xff]
        %v331 = vld [vmem:[%s278 + $0x58] sm:$0xff]
        %v332 = vld [vmem:[%s278 + $0x60] sm:$0xff]
        %v333 = vld [vmem:[%s278 + $0x68] sm:$0xff]
        %v334 = vld [vmem:[%s278 + $0x70] sm:$0xff]
        %v335 = vld [vmem:[%s278 + $0x78] sm:$0xff]
        %v336 = vld [vmem:[%s1] sm:$0x1]
        %v337 = vld [vmem:[%s2] sm:$0x1]
        %338 = vadd.xlane.f32.xlu0 %v320
        %v339 = vpop.xlane.xlu0 %338
        %340 = vadd.xlane.f32.xlu0 %v321
        %v341 = vpop.xlane.xlu0 %340
        %342 = vadd.xlane.f32.xlu0 %v322
        %v343 = vpop.xlane.xlu0 %342
        %344 = vadd.xlane.f32.xlu0 %v323
        %v345 = vpop.xlane.xlu0 %344
        %346 = vadd.xlane.f32.xlu0 %v324
        %v347 = vpop.xlane.xlu0 %346
        %348 = vadd.xlane.f32.xlu0 %v325
        %v349 = vpop.xlane.xlu0 %348
        %350 = vadd.xlane.f32.xlu0 %v326
        %v351 = vpop.xlane.xlu0 %350
        %352 = vadd.xlane.f32.xlu0 %v327
        %v353 = vpop.xlane.xlu0 %352
        %354 = vadd.xlane.f32.xlu0 %v328
        %v355 = vpop.xlane.xlu0 %354
        %356 = vadd.xlane.f32.xlu0 %v329
        %v357 = vpop.xlane.xlu0 %356
        %358 = vadd.xlane.f32.xlu0 %v330
        %v359 = vpop.xlane.xlu0 %358
        %360 = vadd.xlane.f32.xlu0 %v331
        %v361 = vpop.xlane.xlu0 %360
        %362 = vadd.xlane.f32.xlu0 %v332
        %v363 = vpop.xlane.xlu0 %362
        %364 = vadd.xlane.f32.xlu0 %v333
        %v365 = vpop.xlane.xlu0 %364
        %366 = vadd.xlane.f32.xlu0 %v334
        %v367 = vpop.xlane.xlu0 %366
        %368 = vadd.xlane.f32.xlu0 %v335
        %v369 = vpop.xlane.xlu0 %368
        %v370 = vrcp.pop 128.0
        %v371 = vmul.f32 %v339, %v370
        %v372 = vmul.f32 %v341, %v370
        %v373 = vmul.f32 %v343, %v370
        %v374 = vmul.f32 %v345, %v370
        %v375 = vmul.f32 %v347, %v370
        %v376 = vmul.f32 %v349, %v370
        %v377 = vmul.f32 %v351, %v370
        %v378 = vmul.f32 %v353, %v370
        %v379 = vmul.f32 %v355, %v370
        %v380 = vmul.f32 %v357, %v370
        %v381 = vmul.f32 %v359, %v370
        %v382 = vmul.f32 %v361, %v370
        %v383 = vmul.f32 %v363, %v370
        %v384 = vmul.f32 %v365, %v370
        %v385 = vmul.f32 %v367, %v370
        %v386 = vmul.f32 %v369, %v370
        %v387 = vsub.f32 %v320, %v371
        %v388 = vsub.f32 %v321, %v372
        %v389 = vsub.f32 %v322, %v373
        %v390 = vsub.f32 %v323, %v374
        %v391 = vsub.f32 %v324, %v375
        %v392 = vsub.f32 %v325, %v376
        %v393 = vsub.f32 %v326, %v377
        %v394 = vsub.f32 %v327, %v378
        %v395 = vsub.f32 %v328, %v379
        %v396 = vsub.f32 %v329, %v380
        %v397 = vsub.f32 %v330, %v381
        %v398 = vsub.f32 %v331, %v382
        %v399 = vsub.f32 %v332, %v383
        %v400 = vsub.f32 %v333, %v384
        %v401 = vsub.f32 %v334, %v385
        %v402 = vsub.f32 %v335, %v386
        %v403 = vmul.f32 %v387, %v387
        %v404 = vmul.f32 %v388, %v388
        %v405 = vmul.f32 %v389, %v389
        %v406 = vmul.f32 %v390, %v390
        %v407 = vmul.f32 %v391, %v391
        %v408 = vmul.f32 %v392, %v392
        %v409 = vmul.f32 %v393, %v393
        %v410 = vmul.f32 %v394, %v394
        %v411 = vmul.f32 %v395, %v395
        %v412 = vmul.f32 %v396, %v396
        %v413 = vmul.f32 %v397, %v397
        %v414 = vmul.f32 %v398, %v398
        %v415 = vmul.f32 %v399, %v399
        %v416 = vmul.f32 %v400, %v400
        %v417 = vmul.f32 %v401, %v401
        %v418 = vmul.f32 %v402, %v402
        %419 = vadd.xlane.f32.xlu0 %v403
        %v420 = vpop.xlane.xlu0 %419
        %421 = vadd.xlane.f32.xlu0 %v404
        %v422 = vpop.xlane.xlu0 %421
        %423 = vadd.xlane.f32.xlu0 %v405
        %v424 = vpop.xlane.xlu0 %423
        %425 = vadd.xlane.f32.xlu0 %v406
        %v426 = vpop.xlane.xlu0 %425
        %427 = vadd.xlane.f32.xlu0 %v407
        %v428 = vpop.xlane.xlu0 %427
        %429 = vadd.xlane.f32.xlu0 %v408
        %v430 = vpop.xlane.xlu0 %429
        %431 = vadd.xlane.f32.xlu0 %v409
        %v432 = vpop.xlane.xlu0 %431
        %433 = vadd.xlane.f32.xlu0 %v410
        %v434 = vpop.xlane.xlu0 %433
        %435 = vadd.xlane.f32.xlu0 %v411
        %v436 = vpop.xlane.xlu0 %435
        %437 = vadd.xlane.f32.xlu0 %v412
        %v438 = vpop.xlane.xlu0 %437
        %439 = vadd.xlane.f32.xlu0 %v413
        %v440 = vpop.xlane.xlu0 %439
        %441 = vadd.xlane.f32.xlu0 %v414
        %v442 = vpop.xlane.xlu0 %441
        %443 = vadd.xlane.f32.xlu0 %v415
        %v444 = vpop.xlane.xlu0 %443
        %445 = vadd.xlane.f32.xlu0 %v416
        %v446 = vpop.xlane.xlu0 %445
        %447 = vadd.xlane.f32.xlu0 %v417
        %v448 = vpop.xlane.xlu0 %447
        %449 = vadd.xlane.f32.xlu0 %v418
        %v450 = vpop.xlane.xlu0 %449
        %v451 = vmul.f32 %v420, %v370
        %v452 = vmul.f32 %v422, %v370
        %v453 = vmul.f32 %v424, %v370
        %v454 = vmul.f32 %v426, %v370
        %v455 = vmul.f32 %v428, %v370
        %v456 = vmul.f32 %v430, %v370
        %v457 = vmul.f32 %v432, %v370
        %v458 = vmul.f32 %v434, %v370
        %v459 = vmul.f32 %v436, %v370
        %v460 = vmul.f32 %v438, %v370
        %v461 = vmul.f32 %v440, %v370
        %v462 = vmul.f32 %v442, %v370
        %v463 = vmul.f32 %v444, %v370
        %v464 = vmul.f32 %v446, %v370
        %v465 = vmul.f32 %v448, %v370
        %v466 = vmul.f32 %v450, %v370
        %v467 = vadd.f32 %v451, 1e-05
        %v468 = vadd.f32 %v452, 1e-05
        %v469 = vadd.f32 %v453, 1e-05
        %v470 = vadd.f32 %v454, 1e-05
        %v471 = vadd.f32 %v455, 1e-05
        %v472 = vadd.f32 %v456, 1e-05
        %v473 = vadd.f32 %v457, 1e-05
        %v474 = vadd.f32 %v458, 1e-05
        %v475 = vadd.f32 %v459, 1e-05
        %v476 = vadd.f32 %v460, 1e-05
        %v477 = vadd.f32 %v461, 1e-05
        %v478 = vadd.f32 %v462, 1e-05
        %v479 = vadd.f32 %v463, 1e-05
        %v480 = vadd.f32 %v464, 1e-05
        %v481 = vadd.f32 %v465, 1e-05
        %v482 = vadd.f32 %v466, 1e-05
        %v483 = vrsqrt.pop %v467
        %v484 = vrsqrt.pop %v468
        %v485 = vrsqrt.pop %v469
        %v486 = vrsqrt.pop %v470
        %v487 = vrsqrt.pop %v471
        %v488 = vrsqrt.pop %v472
        %v489 = vrsqrt.pop %v473
        %v490 = vrsqrt.pop %v474
        %v491 = vrsqrt.pop %v475
        %v492 = vrsqrt.pop %v476
        %v493 = vrsqrt.pop %v477
        %v494 = vrsqrt.pop %v478
        %v495 = vrsqrt.pop %v479
        %v496 = vrsqrt.pop %v480
        %v497 = vrsqrt.pop %v481
        %v498 = vrsqrt.pop %v482
        %v499 = vmul.f32 %v387, %v483
        %v500 = vmul.f32 %v388, %v484
        %v501 = vmul.f32 %v389, %v485
        %v502 = vmul.f32 %v390, %v486
        %v503 = vmul.f32 %v391, %v487
        %v504 = vmul.f32 %v392, %v488
        %v505 = vmul.f32 %v393, %v489
        %v506 = vmul.f32 %v394, %v490
        %v507 = vmul.f32 %v395, %v491
        %v508 = vmul.f32 %v396, %v492
        %v509 = vmul.f32 %v397, %v493
        %v510 = vmul.f32 %v398, %v494
        %v511 = vmul.f32 %v399, %v495
        %v512 = vmul.f32 %v400, %v496
        %v513 = vmul.f32 %v401, %v497
        %v514 = vmul.f32 %v402, %v498
        %v516 = vlaneseq
        %v517 = vshrl.u32 %v516, 7
        %v518 = vsub.s32 0, %v517
        %v519 = vrot.slane %v336, %v518
        %v521 = vmul.f32 %v499, %v519
        %v522 = vmul.f32 %v500, %v519
        %v523 = vmul.f32 %v501, %v519
        %v524 = vmul.f32 %v502, %v519
        %v525 = vmul.f32 %v503, %v519
        %v526 = vmul.f32 %v504, %v519
        %v527 = vmul.f32 %v505, %v519
        %v528 = vmul.f32 %v506, %v519
        %v529 = vmul.f32 %v507, %v519
        %v530 = vmul.f32 %v508, %v519
        %v531 = vmul.f32 %v509, %v519
        %v532 = vmul.f32 %v510, %v519
        %v533 = vmul.f32 %v511, %v519
        %v534 = vmul.f32 %v512, %v519
        %v535 = vmul.f32 %v513, %v519
        %v536 = vmul.f32 %v514, %v519
        %v538 = vlaneseq
        %v539 = vshrl.u32 %v538, 7
        %v540 = vsub.s32 0, %v539
        %v541 = vrot.slane %v337, %v540
        %v543 = vadd.f32 %v521, %v541
        %v544 = vadd.f32 %v522, %v541
        %v545 = vadd.f32 %v523, %v541
        %v546 = vadd.f32 %v524, %v541
        %v547 = vadd.f32 %v525, %v541
        %v548 = vadd.f32 %v526, %v541
        %v549 = vadd.f32 %v527, %v541
        %v550 = vadd.f32 %v528, %v541
        %v551 = vadd.f32 %v529, %v541
        %v552 = vadd.f32 %v530, %v541
        %v553 = vadd.f32 %v531, %v541
        %v554 = vadd.f32 %v532, %v541
        %v555 = vadd.f32 %v533, %v541
        %v556 = vadd.f32 %v534, %v541
        %v557 = vadd.f32 %v535, %v541
        %v558 = vadd.f32 %v536, %v541
        %v559 = vpack.c.bf16 %v544, %v543
        %v560 = vpack.c.bf16 %v546, %v545
        %v561 = vpack.c.bf16 %v548, %v547
        %v562 = vpack.c.bf16 %v550, %v549
        %v563 = vpack.c.bf16 %v552, %v551
        %v564 = vpack.c.bf16 %v554, %v553
        %v565 = vpack.c.bf16 %v556, %v555
        %v566 = vpack.c.bf16 %v558, %v557
        %v567 = vld [vmem:[#allocation5] sm:$0xff]
        %v568 = vld [vmem:[#allocation5 + $0x8] sm:$0xff]
        %v569 = vld [vmem:[#allocation5 + $0x10] sm:$0xff]
        %v570 = vld [vmem:[#allocation5 + $0x18] sm:$0xff]
        %v571 = vld [vmem:[#allocation5 + $0x20] sm:$0xff]
        %v572 = vld [vmem:[#allocation5 + $0x28] sm:$0xff]
        %v573 = vld [vmem:[#allocation5 + $0x30] sm:$0xff]
        %v574 = vld [vmem:[#allocation5 + $0x38] sm:$0xff]
        %v575 = vld [vmem:[#allocation5 + $0x40] sm:$0xff]
        %v576 = vld [vmem:[#allocation5 + $0x48] sm:$0xff]
        %v577 = vld [vmem:[#allocation5 + $0x50] sm:$0xff]
        %v578 = vld [vmem:[#allocation5 + $0x58] sm:$0xff]
        %v579 = vld [vmem:[#allocation5 + $0x60] sm:$0xff]
        %v580 = vld [vmem:[#allocation5 + $0x68] sm:$0xff]
        %v581 = vld [vmem:[#allocation5 + $0x70] sm:$0xff]
        %v582 = vld [vmem:[#allocation5 + $0x78] sm:$0xff]
        %v583 = vld [vmem:[%s4] sm:$0x3]
        %v585 = vlaneseq
        %v586 = vshrl.u32 %v585, 7
        %v587 = vsub.s32 0, %v586
        %v588 = vrot.slane %v583, %v587
        %v589 = vlaneseq
        %v590 = vshrl.u32 %v589, 7
        %v591 = vsub.s32 1, %v590
        %v592 = vrot.slane %v583, %v591
        %v611 = vunpack.c.l.b16 %v567
        %v612 = vunpack.c.h.b16 %v567
        %v613 = vunpack.c.l.b16 %v568
        %v614 = vunpack.c.h.b16 %v568
        %v615 = vunpack.c.l.b16 %v569
        %v616 = vunpack.c.h.b16 %v569
        %v617 = vunpack.c.l.b16 %v570
        %v618 = vunpack.c.h.b16 %v570
        %v619 = vunpack.c.l.b16 %v571
        %v620 = vunpack.c.h.b16 %v571
        %v621 = vunpack.c.l.b16 %v572
        %v622 = vunpack.c.h.b16 %v572
        %v623 = vunpack.c.l.b16 %v573
        %v624 = vunpack.c.h.b16 %v573
        %v625 = vunpack.c.l.b16 %v574
        %v626 = vunpack.c.h.b16 %v574
        %v627 = vunpack.c.l.b16 %v575
        %v628 = vunpack.c.h.b16 %v575
        %v629 = vunpack.c.l.b16 %v576
        %v630 = vunpack.c.h.b16 %v576
        %v631 = vunpack.c.l.b16 %v577
        %v632 = vunpack.c.h.b16 %v577
        %v633 = vunpack.c.l.b16 %v578
        %v634 = vunpack.c.h.b16 %v578
        %v635 = vunpack.c.l.b16 %v579
        %v636 = vunpack.c.h.b16 %v579
        %v637 = vunpack.c.l.b16 %v580
        %v638 = vunpack.c.h.b16 %v580
        %v639 = vunpack.c.l.b16 %v581
        %v640 = vunpack.c.h.b16 %v581
        %v641 = vunpack.c.l.b16 %v582
        %v642 = vunpack.c.h.b16 %v582
        %v643 = vpack.c.b16 %v613, %v611
        %v644 = vpack.c.b16 %v614, %v612
        %v645 = vpack.c.b16 %v617, %v615
        %v646 = vpack.c.b16 %v618, %v616
        %v647 = vpack.c.b16 %v621, %v619
        %v648 = vpack.c.b16 %v622, %v620
        %v649 = vpack.c.b16 %v625, %v623
        %v650 = vpack.c.b16 %v626, %v624
        %v651 = vpack.c.b16 %v629, %v627
        %v652 = vpack.c.b16 %v630, %v628
        %v653 = vpack.c.b16 %v633, %v631
        %v654 = vpack.c.b16 %v634, %v632
        %v655 = vpack.c.b16 %v637, %v635
        %v656 = vpack.c.b16 %v638, %v636
        %v657 = vpack.c.b16 %v641, %v639
        %v658 = vpack.c.b16 %v642, %v640
        %675 = vmatprep.subr.bf16.mxu0 %v644
        %676 = vmatpush1.bf16.msra.mxu0 %v643
        %677 = vmatprep.subr.bf16.mxu0 %v646
        %678 = vmatpush1.bf16.msra.mxu0 %v645
        %679 = vmatprep.subr.bf16.mxu0 %v648
        %680 = vmatpush1.bf16.msra.mxu0 %v647
        %681 = vmatprep.subr.bf16.mxu0 %v650
        %682 = vmatpush1.bf16.msra.mxu0 %v649
        %683 = vmatprep.subr.bf16.mxu0 %v652
        %684 = vmatpush1.bf16.msra.mxu0 %v651
        %685 = vmatprep.subr.bf16.mxu0 %v654
        %686 = vmatpush1.bf16.msra.mxu0 %v653
        %687 = vmatprep.subr.bf16.mxu0 %v656
        %688 = vmatpush1.bf16.msra.mxu0 %v655
        %689 = vmatprep.subr.bf16.mxu0 %v658
        %690 = vmatpush1.bf16.msra.mxu0 %v657
        %691 = vmatprep.subr.bf16.mxu0 0
        %692 = vmatpush1.bf16.msra.mxu0 0
        %693 = vmatprep.subr.bf16.mxu0 0
        %694 = vmatpush1.bf16.msra.mxu0 0
        %695 = vmatprep.subr.bf16.mxu0 0
        %696 = vmatpush1.bf16.msra.mxu0 0
        %697 = vmatprep.subr.bf16.mxu0 0
        %698 = vmatpush1.bf16.msra.mxu0 0
        %699 = vmatprep.subr.bf16.mxu0 0
        %700 = vmatpush1.bf16.msra.mxu0 0
        %701 = vmatprep.subr.bf16.mxu0 0
        %702 = vmatpush1.bf16.msra.mxu0 0
        %703 = vmatprep.subr.bf16.mxu0 0
        %704 = vmatpush1.bf16.msra.mxu0 0
        %705 = vmatprep.subr.bf16.mxu0 0
        %706 = vmatpush1.bf16.msra.mxu0 0
        %707 = vmatprep.mubr.bf16.mxu0 0
        %708 = vmatmul.mubr.bf16.gmra.mrb[0].mxu0 %v559
        %v709 = vpop.f32.mrb[0].mxu0
        %v710 = vadd.f32 %v588, %v709
        %v711 = vpop.f32.mrb[0].mxu0
        %v712 = vadd.f32 %v592, %v711
        %v713 = vpop.f32.mrb[0].mxu0
        %v714 = vadd.f32 %v588, %v713
        %v715 = vpop.f32.mrb[0].mxu0
        %v716 = vadd.f32 %v592, %v715
        %717 = vmatprep.mubr.bf16.mxu0 0
        %718 = vmatmul.mubr.bf16.gmra.mrb[0].mxu0 %v560
        %v719 = vpop.f32.mrb[0].mxu0
        %v720 = vadd.f32 %v588, %v719
        %v721 = vpop.f32.mrb[0].mxu0
        %v722 = vadd.f32 %v592, %v721
        %v723 = vpop.f32.mrb[0].mxu0
        %v724 = vadd.f32 %v588, %v723
        %v725 = vpop.f32.mrb[0].mxu0
        %v726 = vadd.f32 %v592, %v725
        %727 = vmatprep.mubr.bf16.mxu0 0
        %728 = vmatmul.mubr.bf16.gmra.mrb[0].mxu0 %v561
        %v729 = vpop.f32.mrb[0].mxu0
        %v730 = vadd.f32 %v588, %v729
        %v731 = vpop.f32.mrb[0].mxu0
        %v732 = vadd.f32 %v592, %v731
        %v733 = vpop.f32.mrb[0].mxu0
        %v734 = vadd.f32 %v588, %v733
        %v735 = vpop.f32.mrb[0].mxu0
        %v736 = vadd.f32 %v592, %v735
        %737 = vmatprep.mubr.bf16.mxu0 0
        %738 = vmatmul.mubr.bf16.gmra.mrb[0].mxu0 %v562
        %v739 = vpop.f32.mrb[0].mxu0
        %v740 = vadd.f32 %v588, %v739
        %v741 = vpop.f32.mrb[0].mxu0
        %v742 = vadd.f32 %v592, %v741
        %v743 = vpop.f32.mrb[0].mxu0
        %v744 = vadd.f32 %v588, %v743
        %v745 = vpop.f32.mrb[0].mxu0
        %v746 = vadd.f32 %v592, %v745
        %747 = vmatprep.mubr.bf16.mxu0 0
        %748 = vmatmul.mubr.bf16.gmra.mrb[0].mxu0 %v563
        %v749 = vpop.f32.mrb[0].mxu0
        %v750 = vadd.f32 %v588, %v749
        %v751 = vpop.f32.mrb[0].mxu0
        %v752 = vadd.f32 %v592, %v751
        %v753 = vpop.f32.mrb[0].mxu0
        %v754 = vadd.f32 %v588, %v753
        %v755 = vpop.f32.mrb[0].mxu0
        %v756 = vadd.f32 %v592, %v755
        %757 = vmatprep.mubr.bf16.mxu0 0
        %758 = vmatmul.mubr.bf16.gmra.mrb[0].mxu0 %v564
        %v759 = vpop.f32.mrb[0].mxu0
        %v760 = vadd.f32 %v588, %v759
        %v761 = vpop.f32.mrb[0].mxu0
        %v762 = vadd.f32 %v592, %v761
        %v763 = vpop.f32.mrb[0].mxu0
        %v764 = vadd.f32 %v588, %v763
        %v765 = vpop.f32.mrb[0].mxu0
        %v766 = vadd.f32 %v592, %v765
        %767 = vmatprep.mubr.bf16.mxu0 0
        %768 = vmatmul.mubr.bf16.gmra.mrb[0].mxu0 %v565
        %v769 = vpop.f32.mrb[0].mxu0
        %v770 = vadd.f32 %v588, %v769
        %v771 = vpop.f32.mrb[0].mxu0
        %v772 = vadd.f32 %v592, %v771
        %v773 = vpop.f32.mrb[0].mxu0
        %v774 = vadd.f32 %v588, %v773
        %v775 = vpop.f32.mrb[0].mxu0
        %v776 = vadd.f32 %v592, %v775
        %777 = vmatprep.mubr.bf16.mxu0 0
        %778 = vmatmul.mubr.bf16.gmra.mrb[0].mxu0 %v566
        %v779 = vpop.f32.mrb[0].mxu0
        %v780 = vadd.f32 %v588, %v779
        %v781 = vpop.f32.mrb[0].mxu0
        %v782 = vadd.f32 %v592, %v781
        %v783 = vpop.f32.mrb[0].mxu0
        %v784 = vadd.f32 %v588, %v783
        %v785 = vpop.f32.mrb[0].mxu0
        %v786 = vadd.f32 %v592, %v785
        %787 = vdwg.mxu0
        %v788 = vpack.c.bf16 %v714, %v710
        %v789 = vpack.c.bf16 %v716, %v712
        %v790 = vpack.c.bf16 %v724, %v720
        %v791 = vpack.c.bf16 %v726, %v722
        %v792 = vpack.c.bf16 %v734, %v730
        %v793 = vpack.c.bf16 %v736, %v732
        %v794 = vpack.c.bf16 %v744, %v740
        %v795 = vpack.c.bf16 %v746, %v742
        %v796 = vpack.c.bf16 %v754, %v750
        %v797 = vpack.c.bf16 %v756, %v752
        %v798 = vpack.c.bf16 %v764, %v760
        %v799 = vpack.c.bf16 %v766, %v762
        %v800 = vpack.c.bf16 %v774, %v770
        %v801 = vpack.c.bf16 %v776, %v772
        %v802 = vpack.c.bf16 %v784, %v780
        %v803 = vpack.c.bf16 %v786, %v782
        %v812 = vunpack.c.l.b16 %v788
        %v813 = vunpack.c.h.b16 %v788
        %v814 = vunpack.c.l.b16 %v790
        %v815 = vunpack.c.h.b16 %v790
        %v816 = vunpack.c.l.b16 %v792
        %v817 = vunpack.c.h.b16 %v792
        %v818 = vunpack.c.l.b16 %v794
        %v819 = vunpack.c.h.b16 %v794
        %v820 = vunpack.c.l.b16 %v796
        %v821 = vunpack.c.h.b16 %v796
        %v822 = vunpack.c.l.b16 %v798
        %v823 = vunpack.c.h.b16 %v798
        %v824 = vunpack.c.l.b16 %v800
        %v825 = vunpack.c.h.b16 %v800
        %v826 = vunpack.c.l.b16 %v802
        %v827 = vunpack.c.h.b16 %v802
        %v828 = vpack.c.b16 %v812, %v812
        %v829 = vpack.c.b16 %v813, %v813
        %v830 = vpack.c.b16 %v814, %v814
        %v831 = vpack.c.b16 %v815, %v815
        %v832 = vpack.c.b16 %v816, %v816
        %v833 = vpack.c.b16 %v817, %v817
        %v834 = vpack.c.b16 %v818, %v818
        %v835 = vpack.c.b16 %v819, %v819
        %v836 = vpack.c.b16 %v820, %v820
        %v837 = vpack.c.b16 %v821, %v821
        %v838 = vpack.c.b16 %v822, %v822
        %v839 = vpack.c.b16 %v823, %v823
        %v840 = vpack.c.b16 %v824, %v824
        %v841 = vpack.c.b16 %v825, %v825
        %v842 = vpack.c.b16 %v826, %v826
        %v843 = vpack.c.b16 %v827, %v827
        %860 = vst [vmem:[%s308] sm:$0xf] %v828
        %861 = vst [vmem:[%s308 + $0x4] sm:$0xf] %v829
        %862 = vst [vmem:[%s308 + $0x8] sm:$0xf] %v830
        %863 = vst [vmem:[%s308 + $0xc] sm:$0xf] %v831
        %864 = vst [vmem:[%s308 + $0x10] sm:$0xf] %v832
        %865 = vst [vmem:[%s308 + $0x14] sm:$0xf] %v833
        %866 = vst [vmem:[%s308 + $0x18] sm:$0xf] %v834
        %867 = vst [vmem:[%s308 + $0x1c] sm:$0xf] %v835
        %868 = vst [vmem:[%s308 + $0x20] sm:$0xf] %v836
        %869 = vst [vmem:[%s308 + $0x24] sm:$0xf] %v837
        %870 = vst [vmem:[%s308 + $0x28] sm:$0xf] %v838
        %871 = vst [vmem:[%s308 + $0x2c] sm:$0xf] %v839
        %872 = vst [vmem:[%s308 + $0x30] sm:$0xf] %v840
        %873 = vst [vmem:[%s308 + $0x34] sm:$0xf] %v841
        %874 = vst [vmem:[%s308 + $0x38] sm:$0xf] %v842
        %875 = vst [vmem:[%s308 + $0x3c] sm:$0xf] %v843
        %v884 = vunpack.c.l.b16 %v789
        %v885 = vunpack.c.h.b16 %v789
        %v886 = vunpack.c.l.b16 %v791
        %v887 = vunpack.c.h.b16 %v791
        %v888 = vunpack.c.l.b16 %v793
        %v889 = vunpack.c.h.b16 %v793
        %v890 = vunpack.c.l.b16 %v795
        %v891 = vunpack.c.h.b16 %v795
        %v892 = vunpack.c.l.b16 %v797
        %v893 = vunpack.c.h.b16 %v797
        %v894 = vunpack.c.l.b16 %v799
        %v895 = vunpack.c.h.b16 %v799
        %v896 = vunpack.c.l.b16 %v801
        %v897 = vunpack.c.h.b16 %v801
        %v898 = vunpack.c.l.b16 %v803
        %v899 = vunpack.c.h.b16 %v803
        %v900 = vpack.c.b16 %v884, %v884
        %v901 = vpack.c.b16 %v885, %v885
        %v902 = vpack.c.b16 %v886, %v886
        %v903 = vpack.c.b16 %v887, %v887
        %v904 = vpack.c.b16 %v888, %v888
        %v905 = vpack.c.b16 %v889, %v889
        %v906 = vpack.c.b16 %v890, %v890
        %v907 = vpack.c.b16 %v891, %v891
        %v908 = vpack.c.b16 %v892, %v892
        %v909 = vpack.c.b16 %v893, %v893
        %v910 = vpack.c.b16 %v894, %v894
        %v911 = vpack.c.b16 %v895, %v895
        %v912 = vpack.c.b16 %v896, %v896
        %v913 = vpack.c.b16 %v897, %v897
        %v914 = vpack.c.b16 %v898, %v898
        %v915 = vpack.c.b16 %v899, %v899
        %932 = vst [vmem:[%s315] sm:$0xf] %v900
        %933 = vst [vmem:[%s315 + $0x4] sm:$0xf] %v901
        %934 = vst [vmem:[%s315 + $0x8] sm:$0xf] %v902
        %935 = vst [vmem:[%s315 + $0xc] sm:$0xf] %v903
        %936 = vst [vmem:[%s315 + $0x10] sm:$0xf] %v904
        %937 = vst [vmem:[%s315 + $0x14] sm:$0xf] %v905
        %938 = vst [vmem:[%s315 + $0x18] sm:$0xf] %v906
        %939 = vst [vmem:[%s315 + $0x1c] sm:$0xf] %v907
        %940 = vst [vmem:[%s315 + $0x20] sm:$0xf] %v908
        %941 = vst [vmem:[%s315 + $0x24] sm:$0xf] %v909
        %942 = vst [vmem:[%s315 + $0x28] sm:$0xf] %v910
        %943 = vst [vmem:[%s315 + $0x2c] sm:$0xf] %v911
        %944 = vst [vmem:[%s315 + $0x30] sm:$0xf] %v912
        %945 = vst [vmem:[%s315 + $0x34] sm:$0xf] %v913
        %946 = vst [vmem:[%s315 + $0x38] sm:$0xf] %v914
        %947 = vst [vmem:[%s315 + $0x3c] sm:$0xf] %v915
        %s948 = sand.u32 %s162, 1
        %s949 = scalar_lea.sflag [#allocation4], %s948
        %s950 = sand.u32 %s162, 1
        %s951 = smul.addr %s950, 64
        %s952 = scalar_lea.vmem [#allocation7], %s951
        %s953 = sand.u32 %s190, 1
        %s954 = scalar_lea.sflag [#allocation9], %s953
        %s955 = sand.u32 %s190, 1
        %s956 = smul.addr %s955, 64
        %s957 = scalar_lea.vmem [#allocation8], %s956
        // Predicated region
        $region49: #{tpu_custom_call.1} parent=39 // pred_check
          %p958 = pneg %p172
        $region50: #{tpu_custom_call.1} parent=39 // pred_check_branch
          %960 = sbr.rel (%p958) target = $region52
        $region51: #{tpu_custom_call.1} parent=39 // pred_region
          %s961 = smul.u32 16, %s33
          %s963 = ssub.s32 1024, 1024
          %964 = vsyncadd %s949, %s963
          %s965 = smul.addr %s32, 32
          %s966 = sadd.s32 %s961, %s965
          %s967 = smul.addr %s966, 64
          %s968 = scalar_lea.hbm %s5, %s967
          %s969 = sshll.u32 %s952, 4
          %s970 = int_to_ptr.vmem [resolvable:$true] %s969
          %975 = dma.vmem_to_hbm [thread:$0]  %s970, 1024, %s968, %s949, 64, 64, 4
        $region52: #{tpu_custom_call.1} parent=39 // pred_fallthru
          _
        // Predicated region
        $region53: #{tpu_custom_call.1} parent=39 // pred_check
          %p976 = pneg %p200
        $region54: #{tpu_custom_call.1} parent=39 // pred_check_branch
          %978 = sbr.rel (%p976) target = $region56
        $region55: #{tpu_custom_call.1} parent=39 // pred_region
          %s979 = smul.u32 16, %s33
          %s981 = ssub.s32 1024, 1024
          %982 = vsyncadd %s954, %s981
          %s983 = smul.addr %s32, 32
          %s984 = sadd.s32 %s979, %s983
          %s985 = smul.addr %s984, 64
          %s986 = scalar_lea.hbm %s6, %s985
          %s987 = sshll.u32 %s957, 4
          %s988 = int_to_ptr.vmem [resolvable:$true] %s987
          %993 = dma.vmem_to_hbm [thread:$0]  %s988, 1024, %s986, %s954, 64, 64, 4
        $region56: #{tpu_custom_call.1} parent=39 // pred_fallthru
          _
      $region40: #{tpu_custom_call.1} parent=5 // pred_fallthru
        _
      %p994 = scmp.le.s32.totalorder 2, %s23
      // Predicated region
      $region57: #{tpu_custom_call.1} parent=5 // pred_check
        %p995 = pneg %p994
      $region58: #{tpu_custom_call.1} parent=5 // pred_check_branch
        %997 = sbr.rel (%p995) target = $region60
      $region59: #{tpu_custom_call.1} parent=5 // pred_region
        %s998 = ssub.s32 %s23, 2
        // Predicated region
        $region61: #{tpu_custom_call.1} parent=59 // pred_check
          %p999 = pneg %p178
        $region62: #{tpu_custom_call.1} parent=59 // pred_check_branch
          %1001 = sbr.rel (%p999) target = $region64
        $region63: #{tpu_custom_call.1} parent=59 // pred_region
          %s1002 = sand.u32 %s163, 1
          %s1003 = scalar_lea.sflag [#allocation4], %s1002
          %s1004 = sand.u32 %s163, 1
          %s1005 = smul.addr %s1004, 64
          %s1006 = scalar_lea.vmem [#allocation7], %s1005
          %1007 = dma.done %s1003, 1024
        $region64: #{tpu_custom_call.1} parent=59 // pred_fallthru
          _
        // Predicated region
        $region65: #{tpu_custom_call.1} parent=59 // pred_check
          %p1008 = pneg %p206
        $region66: #{tpu_custom_call.1} parent=59 // pred_check_branch
          %1010 = sbr.rel (%p1008) target = $region68
        $region67: #{tpu_custom_call.1} parent=59 // pred_region
          %s1011 = sand.u32 %s191, 1
          %s1012 = scalar_lea.sflag [#allocation9], %s1011
          %s1013 = sand.u32 %s191, 1
          %s1014 = smul.addr %s1013, 64
          %s1015 = scalar_lea.vmem [#allocation8], %s1014
          %1016 = dma.done %s1012, 1024
        $region68: #{tpu_custom_call.1} parent=59 // pred_fallthru
          _
      $region60: #{tpu_custom_call.1} parent=5 // pred_fallthru
        _
    $region6: #{tpu_custom_call.1} parent=1 // loop_footer
      %s27 = sadd.s32 1, %s23
    $region7: #{tpu_custom_call.1} parent=1 // loop_footer_branch
      %22 = sbr.rel target = $region3
    $region8: #{tpu_custom_call.1} parent=1 // loop_exit
      _
    %1017 = vsyncpa [#allocation3], 1
    %s1018 = scalar_lea.sflag [#allocation3], 1
    %1019 = vsyncpa %s1018, 1
    %1020 = vsyncpa [#allocation6], 1
    %1021 = vsyncpa [#allocation4], 1
    %s1022 = scalar_lea.sflag [#allocation4], 1
    %1023 = vsyncpa %s1022, 1
    %1024 = vsyncpa [#allocation9], 1
    %s1025 = scalar_lea.sflag [#allocation9], 1
    %1026 = vsyncpa %s1025, 1

</llo_original>
